<compile_context>
chip_gen: v7x
topology: tpu7x:2x2x1
jax: 0.10.0
libtpu: 0.0.40
codegen_flags: <defaults>
</compile_context>

<pallas_src>
import jax
import jax.numpy as jnp
from jax.experimental import pallas as pl
from jax.experimental.pallas import tpu as pltpu

EPS = 1e-6


def _round_up(x, m):
    return ((x + m - 1) // m) * m


def _sublane_multiple(dtype):
    """Packed-sublane multiple for the I/O dtype (8 f32 / 16 bf16 / 32 int8)."""
    itemsize = jnp.dtype(dtype).itemsize
    return max(8, 32 // max(itemsize, 1))


def _vmem_budgets():
    """(vmem_limit_bytes, block_working_set_budget_bytes), generation-aware."""
    try:
        cap = pltpu.get_tpu_info().vmem_capacity_bytes
    except Exception:
        cap = 64 * 1024 * 1024  # conservative: assume v7x-sized VMEM
    if cap >= 100 * 1024 * 1024:
        # v5e / v6e: 128 MiB physical VMEM -> larger blocks, fewer grid steps.
        return 96 * 1024 * 1024, 40 * 1024 * 1024
    # v7x: 64 MiB per TensorCore -> stay comfortably under it.
    return 48 * 1024 * 1024, 24 * 1024 * 1024


def _pick_tile_rows(rows, d, dtype, block_budget):
    """Largest sublane-aligned row tile fitting the working-set budget, capped
    so the grid keeps >= ~4 blocks (>= 2 per TensorCore on v7x)."""
    itemsize = jnp.dtype(dtype).itemsize
    mult = _sublane_multiple(dtype)
    # 2 pipeline buffers each for input + output blocks (I/O dtype) plus ~2
    # f32-sized in-kernel intermediates per row (x_f32 and the fused result).
    per_row_bytes = 4 * d * itemsize + 2 * d * 4
    tr = block_budget // max(per_row_bytes, 1)
    tr = max(mult, (int(tr) // mult) * mult)
    # Keep at least ~4 grid blocks so both v7x TensorCores stay busy and each
    # core keeps DMA/compute pipeline depth.
    target = max(mult, _round_up((rows + 3) // 4, mult))
    tr = min(tr, target)
    # No point tiling beyond the sublane-rounded number of rows.
    rows_up = _round_up(rows, mult)
    tr = min(tr, rows_up)
    tr = max(tr, mult)
    return min(tr, 4096)


def layernorm_kernel(params_ref, x_ref, o_ref):
    # params_ref: SMEM float32[2] = [alpha, bias]  (read before vector refs).
    alpha = params_ref[0]
    bias = params_ref[1]

    # x_ref/o_ref: VMEM (tile_rows, D) block of the flattened (rows, D) input.
    x = x_ref[...].astype(jnp.float32)
    d = x.shape[-1]

    # One-pass statistics: a single read of the tile produces both sums.
    s1 = jnp.sum(x, axis=-1, keepdims=True)
    s2 = jnp.sum(x * x, axis=-1, keepdims=True)
    mean = s1 * (1.0 / d)
    # PyTorch x.std(dim=-1) is the *unbiased* estimator (divides by N-1).
    var = (s2 - s1 * mean) * (1.0 / (d - 1))
    var = jnp.maximum(var, 0.0)  # guard cancellation-induced tiny negatives
    std = jnp.sqrt(var)

    # Per-row reciprocal on the (tile_rows, 1) column; off the hot path.
    inv = pl.reciprocal(std + EPS, approx=False)

    # Fused per-element epilogue: y = a_row * x + b_row (no diff tile).
    a_row = alpha * inv
    b_row = bias - a_row * mean
    o_ref[...] = (a_row * x + b_row).astype(o_ref.dtype)


def layer_normalization(x, alpha, bias, *, tile_rows=None):
    """Pallas LayerNormalization over the last axis of x.

    x:     (..., D) float array
    alpha: scalar parameter (PyTorch nn.Parameter(torch.ones(1)))
    bias:  scalar parameter (PyTorch nn.Parameter(torch.zeros(1)))
    """
    orig_shape = x.shape
    d = orig_shape[-1]
    assert d > 1, "LayerNormalization needs last dim > 1 (unbiased std uses N-1)"
    rows = 1
    for s in orig_shape[:-1]:
        rows *= s
    x2 = x.reshape(rows, d)

    vmem_limit, block_budget = _vmem_budgets()
    if tile_rows is None:
        tile_rows = _pick_tile_rows(rows, d, x.dtype, block_budget)

    params = jnp.stack([jnp.asarray(alpha, jnp.float32).reshape(()),
                        jnp.asarray(bias, jnp.float32).reshape(())])

    grid = (pl.cdiv(rows, tile_rows),)  # ragged last block handled by Pallas

    out = pl.pallas_call(
        layernorm_kernel,
        out_shape=jax.ShapeDtypeStruct((rows, d), x.dtype),
        grid_spec=pltpu.PrefetchScalarGridSpec(
            num_scalar_prefetch=0,
            grid=grid,
            in_specs=[
                pl.BlockSpec(memory_space=pltpu.MemorySpace.SMEM),   # params
                pl.BlockSpec((tile_rows, d), lambda i: (i, 0)),      # x rows
            ],
            out_specs=pl.BlockSpec((tile_rows, d), lambda i: (i, 0)),
        ),
        compiler_params=pltpu.CompilerParams(
            dimension_semantics=("parallel",),          # megacore on v7x
            vmem_limit_bytes=vmem_limit,
        ),
    )(params, x2)

    return out.reshape(orig_shape)


class Encoder:
    """JAX/Pallas mirror of the PyTorch Encoder module.

    layers: list of callables taking (x, mask) -> x.  The reference module
    does not define any concrete layer class, so an empty list is used; the
    forward pass is then exactly the final LayerNormalization.
    """

    def __init__(self, layers=()):
        self.layers = list(layers)
        # LayerNormalization parameters (deterministic init, as in PyTorch):
        self.alpha = jnp.ones((1,), jnp.float32)
        self.bias = jnp.zeros((1,), jnp.float32)

    def __call__(self, x, mask):
        for layer in self.layers:
            x = layer(x, mask)
        return layer_normalization(x, self.alpha[0], self.bias[0])


if __name__ == "__main__":
    key = jax.random.PRNGKey(0)
    batch, seq, d_model = 2, 8, 128  # lane-dense d_model (multiple of 128)
    kx, _ = jax.random.split(key)
    x = jax.random.normal(kx, (batch, seq, d_model), dtype=jnp.float32)
    mask = jnp.ones((batch, 1, seq, seq), dtype=jnp.float32)  # unused by norm

    enc = Encoder(layers=[])
    out = enc(x, mask)
    out = jax.block_until_ready(out)

    # Pure-JAX reference of the PyTorch forward (unbiased std, eps on std).
    mean = jnp.mean(x, axis=-1, keepdims=True)
    std = jnp.sqrt(jnp.sum((x - mean) ** 2, axis=-1, keepdims=True)
                   / (d_model - 1))
    ref = 1.0 * (x - mean) / (std + EPS) + 0.0

    assert out.shape == x.shape and out.dtype == x.dtype
    assert jnp.max(jnp.abs(out - ref)) < 1e-5
    print("KERNEL_OK")
</pallas_src>

<mosaic_0001>
module attributes {stable_mosaic.version = 11 : i64} {
  func.func @layernorm_kernel(%arg0: i32, %arg1: memref<2xf32, #tpu.memory_space<smem>>, %arg2: memref<8x128xf32, #tpu.memory_space<vmem>>, %arg3: memref<8x128xf32, #tpu.memory_space<vmem>>) attributes {dimension_semantics = [#tpu.dimension_semantics<parallel>], iteration_bounds = array<i64: 2>, scalar_prefetch = 0 : i64, scratch_operands = 0 : i64, tpu.core_type = #tpu.core_type<tc>, window_params = [{transform_indices = @transform_0, window_bounds = array<i64: 2>}, {transform_indices = @transform_1, window_bounds = array<i64: 8, 128>}, {transform_indices = @transform_2, window_bounds = array<i64: 8, 128>}]} {
    %c0 = arith.constant 0 : index
    %0 = memref.load %arg1[%c0] : memref<2xf32, #tpu.memory_space<smem>>
    %c1 = arith.constant 1 : index
    %1 = memref.load %arg1[%c1] : memref<2xf32, #tpu.memory_space<smem>>
    %c0_0 = arith.constant 0 : index
    %c0_1 = arith.constant 0 : index
    %2 = vector.load %arg2[%c0_0, %c0_1] : memref<8x128xf32, #tpu.memory_space<vmem>>, vector<8x128xf32>
    %cst = arith.constant dense<0.000000e+00> : vector<8xf32>
    %3 = vector.multi_reduction <add>, %2, %cst [1] : vector<8x128xf32> to vector<8xf32>
    %4 = vector.shape_cast %3 : vector<8xf32> to vector<8x1xf32>
    %5 = arith.mulf %2, %2 : vector<8x128xf32>
    %cst_2 = arith.constant dense<0.000000e+00> : vector<8xf32>
    %6 = vector.multi_reduction <add>, %5, %cst_2 [1] : vector<8x128xf32> to vector<8xf32>
    %7 = vector.shape_cast %6 : vector<8xf32> to vector<8x1xf32>
    %cst_3 = arith.constant 7.812500e-03 : f32
    %8 = vector.broadcast %cst_3 : f32 to vector<8x1xf32>
    %9 = arith.mulf %4, %8 : vector<8x1xf32>
    %10 = arith.mulf %4, %9 : vector<8x1xf32>
    %11 = arith.subf %7, %10 : vector<8x1xf32>
    %cst_4 = arith.constant 0.00787401571 : f32
    %12 = vector.broadcast %cst_4 : f32 to vector<8x1xf32>
    %13 = arith.mulf %11, %12 : vector<8x1xf32>
    %cst_5 = arith.constant 0.000000e+00 : f32
    %14 = vector.broadcast %cst_5 : f32 to vector<8x1xf32>
    %15 = arith.maximumf %13, %14 : vector<8x1xf32>
    %16 = math.sqrt %15 : vector<8x1xf32>
    %cst_6 = arith.constant 9.99999997E-7 : f32
    %17 = vector.broadcast %cst_6 : f32 to vector<8x1xf32>
    %18 = arith.addf %16, %17 : vector<8x1xf32>
    %19 = tpu.reciprocal %18 : vector<8x1xf32> -> vector<8x1xf32>
    %20 = vector.broadcast %0 : f32 to vector<8x1xf32>
    %21 = arith.mulf %20, %19 : vector<8x1xf32>
    %22 = arith.mulf %21, %9 : vector<8x1xf32>
    %23 = vector.broadcast %1 : f32 to vector<8x1xf32>
    %24 = arith.subf %23, %22 : vector<8x1xf32>
    %25 = vector.broadcast %21 : vector<8x1xf32> to vector<8x128xf32>
    %26 = arith.mulf %25, %2 : vector<8x128xf32>
    %27 = vector.broadcast %24 : vector<8x1xf32> to vector<8x128xf32>
    %28 = arith.addf %26, %27 : vector<8x128xf32>
    %c0_7 = arith.constant 0 : index
    %c0_8 = arith.constant 0 : index
    %29 = vector.load %arg3[%c0_7, %c0_8] : memref<8x128xf32, #tpu.memory_space<vmem>>, vector<8x128xf32>
    tpu.vector_store %arg3[%c0_7, %c0_8], %28 {strides = array<i32>} : memref<8x128xf32, #tpu.memory_space<vmem>>, vector<8x128xf32>,
    return
  }
  func.func @transform_0(%arg0: i32) -> i32 {
    %c0_i32 = arith.constant 0 : i32
    %c0_i32_0 = arith.constant 0 : i32
    return %c0_i32 : i32
  }
  func.func @transform_1(%arg0: i32) -> (i32, i32) {
    %c0_i32 = arith.constant 0 : i32
    %c0_i32_0 = arith.constant 0 : i32
    return %arg0, %c0_i32 : i32, i32
  }
  func.func @transform_2(%arg0: i32) -> (i32, i32) {
    %c0_i32 = arith.constant 0 : i32
    %c0_i32_0 = arith.constant 0 : i32
    return %arg0, %c0_i32 : i32, i32
  }
}

</mosaic_0001>

<llo_original>
// kernel: tpu_custom_call.1
$region0: #{tpu_custom_call.1}
  #allocation0 [shape = 'u32[]', space=smem, size = 0x4, offset = 0x4, fixed_abs, tag = 'smem constant byte address 0x4 - core index']
  #allocation1 [shape = 'u32[144,128]{1,0:T(1,128)}', space=vmem, size = 0x12000, scoped, tag = 'internal scratch']
  %s0 = inlined_call_operand.hbm [shape: f32[2], index: 0, kind: input, shape index: {}]
  %s1 = inlined_call_operand.hbm [shape: f32[16,128], index: 1, kind: input, shape index: {}]
  %s2 = inlined_call_operand.hbm [shape: f32[16,128], index: 2, kind: output, shape index: {}]
  %s3 = sld [smem:[#allocation0]]
  $region49: #{tpu_custom_call.1} parent=0
    _
  %s5 = ssub.s32 1, %s3
  %s6 = scalar_select 0, %s5, %s3
  $region1: #{tpu_custom_call.1} parent=0
    #allocation2 [shape = 'u8[512]{0}', space=smem, size = 0x200, scoped, tag = 'input window, operand 0, single buffered']
    #allocation3 [shape = 's32[2]{0}', space=sflag, size = 0x8, scoped, tag = 'scoped memory for tpu_custom_call.1']
    #allocation4 [shape = 's32[2]{0}', space=sflag, size = 0x8, scoped, tag = 'scoped memory for tpu_custom_call.1']
    #allocation5 [shape = 's32[2]{0}', space=sflag, size = 0x8, scoped, tag = 'scoped memory for tpu_custom_call.1']
    #allocation6 [shape = 'u8[8192]{0}', space=vmem, size = 0x2000, scoped, tag = 'input window, operand 1']
    #allocation7 [shape = 'u8[8192]{0}', space=vmem, size = 0x2000, scoped, tag = 'output window, operand 0']
    %7 = vsyncpa [#allocation5], 0
    %8 = vsyncpa [#allocation3], 0
    %s9 = scalar_lea.sflag [#allocation3], 1
    %10 = vsyncpa %s9, 0
    %11 = vsyncpa [#allocation4], 0
    %s12 = scalar_lea.sflag [#allocation4], 1
    %13 = vsyncpa %s12, 0
    loop: start=0, step=1, limit=4
    $region2: #{tpu_custom_call.1} parent=1 // loop_pre_header
      _
    $region3: #{tpu_custom_call.1} parent=1 // loop_header
      %s15 = sphi 0, %s19
      %p16 = scmp.ge.s32.totalorder %s15, 4
      %s23 = sphi 0, %s23
      %s25 = sphi 0, %s23
      %s26 = sphi 0, %s25
      %s40 = sphi 0, %s26
      %s46 = sphi 0, %s48
      %s49 = sphi 0, %s46
      %s50 = sphi 0, %s49
      %s66 = sphi 0, %s50
      %s72 = sphi 0, %s74
      %s75 = sphi 0, %s72
      %s76 = sphi 0, %s75
      %s92 = sphi 0, %s76
    $region4: #{tpu_custom_call.1} parent=1 // loop_header_branch
      %18 = sbr.rel (%p16) target = $region8
    $region5: #{tpu_custom_call.1} parent=1 // loop_body
      %s20 = ssub.s32 %s15, 1
      %s21 = ssub.s32 %s15, 2
      %s22 = sadd.s32 %s15, 1
      %s24 = sadd.s32 %s23, 1
      %p27 = scmp.eq.s32.totalorder %s15, 1
      %p28 = scmp.ne.s32.totalorder %s23, %s25
      %p29 = scmp.eq.s32.totalorder %s15, 0
      %p30 = por %p28, %p29
      %p31 = scmp.ne.s32.totalorder %s23, %s25
      %p32 = scmp.eq.s32.totalorder %s20, 1
      %p33 = por %p31, %p32
      %p34 = scmp.ne.s32.totalorder %s25, %s26
      %p35 = scmp.eq.s32.totalorder %s20, 0
      %p36 = por %p34, %p35
      %p37 = scmp.ne.s32.totalorder %s25, %s26
      %p38 = scmp.eq.s32.totalorder %s21, 1
      %p39 = por %p37, %p38
      %p41 = scmp.ne.s32.totalorder %s26, %s40
      %p42 = scmp.eq.s32.totalorder %s21, 0
      %p43 = por %p41, %p42
      %s44 = ssub.s32 %s15, %s22
      %p45 = scmp.eq.s32.totalorder %s44, 0
      %s47 = sadd.s32 %s46, 1
      %s48 = scalar_select %p45, %s46, %s47
      %p51 = pneg %p45
      %p52 = scmp.eq.s32.totalorder %s15, 1
      %p53 = por %p51, %p52
      %p54 = scmp.ne.s32.totalorder %s46, %s49
      %p55 = scmp.eq.s32.totalorder %s15, 0
      %p56 = por %p54, %p55
      %p57 = scmp.ne.s32.totalorder %s46, %s49
      %p58 = scmp.eq.s32.totalorder %s20, 1
      %p59 = por %p57, %p58
      %p60 = scmp.ne.s32.totalorder %s49, %s50
      %p61 = scmp.eq.s32.totalorder %s20, 0
      %p62 = por %p60, %p61
      %p63 = scmp.ne.s32.totalorder %s49, %s50
      %p64 = scmp.eq.s32.totalorder %s21, 1
      %p65 = por %p63, %p64
      %p67 = scmp.ne.s32.totalorder %s50, %s66
      %p68 = scmp.eq.s32.totalorder %s21, 0
      %p69 = por %p67, %p68
      %s70 = ssub.s32 %s15, %s22
      %p71 = scmp.eq.s32.totalorder %s70, 0
      %s73 = sadd.s32 %s72, 1
      %s74 = scalar_select %p71, %s72, %s73
      %p77 = pneg %p71
      %p78 = scmp.eq.s32.totalorder %s15, 1
      %p79 = por %p77, %p78
      %p80 = scmp.ne.s32.totalorder %s72, %s75
      %p81 = scmp.eq.s32.totalorder %s15, 0
      %p82 = por %p80, %p81
      %p83 = scmp.ne.s32.totalorder %s72, %s75
      %p84 = scmp.eq.s32.totalorder %s20, 1
      %p85 = por %p83, %p84
      %p86 = scmp.ne.s32.totalorder %s75, %s76
      %p87 = scmp.eq.s32.totalorder %s20, 0
      %p88 = por %p86, %p87
      %p89 = scmp.ne.s32.totalorder %s75, %s76
      %p90 = scmp.eq.s32.totalorder %s21, 1
      %p91 = por %p89, %p90
      %p93 = scmp.ne.s32.totalorder %s76, %s92
      %p94 = scmp.eq.s32.totalorder %s21, 0
      %p95 = por %p93, %p94
      %p96 = scmp.le.s32.totalorder 1, %s15
      %p97 = scmp.lt.s32.totalorder %s15, 3
      %p98 = pnand %p96, %p97
      %p99 = pneg %p98
      // Predicated region
      $region9: #{tpu_custom_call.1} parent=5 // pred_check
        _
      $region10: #{tpu_custom_call.1} parent=5 // pred_check_branch
        %101 = sbr.rel (%p98) target = $region12
      $region11: #{tpu_custom_call.1} parent=5 // pred_region
        %s102 = ssub.s32 %s15, 1
        // Predicated region
        $region13: #{tpu_custom_call.1} parent=11 // pred_check
          %p103 = pneg %p36
        $region14: #{tpu_custom_call.1} parent=11 // pred_check_branch
          %105 = sbr.rel (%p103) target = $region16
        $region15: #{tpu_custom_call.1} parent=11 // pred_region
          %s107 = ssub.s32 16, 16
          %108 = vsyncadd [#allocation5], %s107
          %111 = dma.hbm_to_smem %s0, 16, [#allocation2], [#allocation5]
        $region16: #{tpu_custom_call.1} parent=11 // pred_fallthru
          _
      $region12: #{tpu_custom_call.1} parent=5 // pred_fallthru
        _
      %p112 = scmp.lt.s32.totalorder %s15, 2
      // Predicated region
      $region17: #{tpu_custom_call.1} parent=5 // pred_check
        %p113 = pneg %p112
      $region18: #{tpu_custom_call.1} parent=5 // pred_check_branch
        %115 = sbr.rel (%p113) target = $region20
      $region19: #{tpu_custom_call.1} parent=5 // pred_region
        // Predicated region
        $region21: #{tpu_custom_call.1} parent=19 // pred_check
          %p116 = pneg %p56
        $region22: #{tpu_custom_call.1} parent=19 // pred_check_branch
          %118 = sbr.rel (%p116) target = $region24
        $region23: #{tpu_custom_call.1} parent=19 // pred_region
          %s119 = sand.u32 %s46, 1
          %s120 = scalar_lea.sflag [#allocation3], %s119
          %s121 = sand.u32 %s46, 1
          %s122 = smul.addr %s121, 8
          %s123 = scalar_lea.vmem [#allocation6], %s122
          %s125 = ssub.s32 128, 128
          %126 = vsyncadd %s120, %s125
          %s127 = smul.addr %s15, 128
          %s128 = scalar_lea.hbm %s1, %s127
          %s130 = sshll.u32 %s123, 4
          %s131 = int_to_ptr.vmem [resolvable:$true] %s130
          %133 = dma.hbm_to_vmem [thread:$0]  %s128, 128, %s131, %s120
        $region24: #{tpu_custom_call.1} parent=19 // pred_fallthru
          _
      $region20: #{tpu_custom_call.1} parent=5 // pred_fallthru
        _
      %p134 = scmp.le.s32.totalorder 1, %s15
      %p135 = scmp.lt.s32.totalorder %s15, 3
      %p136 = pnand %p134, %p135
      %p137 = pneg %p136
      // Predicated region
      $region25: #{tpu_custom_call.1} parent=5 // pred_check
        _
      $region26: #{tpu_custom_call.1} parent=5 // pred_check_branch
        %139 = sbr.rel (%p136) target = $region28
      $region27: #{tpu_custom_call.1} parent=5 // pred_region
        %s140 = ssub.s32 %s15, 1
        // Predicated region
        $region29: #{tpu_custom_call.1} parent=27 // pred_check
          %p141 = pneg %p36
        $region30: #{tpu_custom_call.1} parent=27 // pred_check_branch
          %143 = sbr.rel (%p141) target = $region32
        $region31: #{tpu_custom_call.1} parent=27 // pred_region
          %144 = dma.done [#allocation5], 16
        $region32: #{tpu_custom_call.1} parent=27 // pred_fallthru
          _
        %s145 = sand.u32 %s49, 1
        %s146 = scalar_lea.sflag [#allocation3], %s145
        %s147 = sand.u32 %s49, 1
        %s148 = smul.addr %s147, 8
        %s149 = scalar_lea.vmem [#allocation6], %s148
        // Predicated region
        $region33: #{tpu_custom_call.1} parent=27 // pred_check
          %p150 = pneg %p62
        $region34: #{tpu_custom_call.1} parent=27 // pred_check_branch
          %152 = sbr.rel (%p150) target = $region36
        $region35: #{tpu_custom_call.1} parent=27 // pred_region
          %153 = dma.done %s146, 128
        $region36: #{tpu_custom_call.1} parent=27 // pred_fallthru
          _
        %154 = sfence
        %p155 = pneg %p36
        %p156 = pneg %p33
        %s157 = sand.u32 %s49, 1
        %s158 = scalar_lea.sflag [#allocation3], %s157
        %s159 = sand.u32 %s49, 1
        %s160 = smul.addr %s159, 8
        %s161 = scalar_lea.vmem [#allocation6], %s160
        %p162 = pneg %p62
        %p163 = pneg %p59
        %p164 = pneg %p88
        %p165 = pneg %p85
        %s166 = sand.u32 %s75, 1
        %s167 = scalar_lea.sflag [#allocation4], %s166
        %s168 = sand.u32 %s75, 1
        %s169 = smul.addr %s168, 8
        %s170 = scalar_lea.vmem [#allocation7], %s169
        %s171 = sld [smem:[#allocation2]]
        %s172 = sld [smem:[#allocation2 + $0x1]]
        %v173 = vld [vmem:[%s149] sm:$0xff]
        %174 = vadd.xlane.f32.xlu0 %v173
        %v175 = vpop.xlane.xlu0 %174
        %v176 = vmul.f32 %v173, %v173
        %177 = vadd.xlane.f32.xlu0 %v176
        %v178 = vpop.xlane.xlu0 %177
        %v179 = vmul.f32 %v175, 0.0078125
        %v180 = vmul.f32 %v175, %v179
        %v181 = vsub.f32 %v178, %v180
        %v182 = vmul.f32 %v181, 0.007874016
        %v183 = vmax.f32 %v182, 0.0
        %v184 = vrsqrt.pop %v183
        %v185 = vmul.f32 %v183, %v184
        %vm186 = vcmp.eq.f32.partialorder %v183, inf
        %v187 = vsel %vm186, %v183, %v185
        %vm188 = vcmp.eq.f32.partialorder %v183, 0.0
        %v189 = vand.u32 %v183, 2147483648
        %v190 = vsel %vm188, %v189, %v187
        %v191 = vadd.f32 %v190, 1e-06
        %v192 = vrcp.pop %v191
        %v193 = vstv %s171
        %v194 = vmul.f32 %v193, %v192
        %v195 = vmul.f32 %v194, %v179
        %v196 = vstv %s172
        %v197 = vsub.f32 %v196, %v195
        %v198 = vmul.f32 %v194, %v173
        %v199 = vadd.f32 %v198, %v197
        %200 = vst [vmem:[%s170] sm:$0xff] %v199
        %s201 = sand.u32 %s75, 1
        %s202 = scalar_lea.sflag [#allocation4], %s201
        %s203 = sand.u32 %s75, 1
        %s204 = smul.addr %s203, 8
        %s205 = scalar_lea.vmem [#allocation7], %s204
        // Predicated region
        $region37: #{tpu_custom_call.1} parent=27 // pred_check
          %p206 = pneg %p85
        $region38: #{tpu_custom_call.1} parent=27 // pred_check_branch
          %208 = sbr.rel (%p206) target = $region40
        $region39: #{tpu_custom_call.1} parent=27 // pred_region
          %s210 = ssub.s32 128, 128
          %211 = vsyncadd %s202, %s210
          %s212 = smul.addr %s20, 128
          %s213 = scalar_lea.hbm %s2, %s212
          %s215 = sshll.u32 %s205, 4
          %s216 = int_to_ptr.vmem [resolvable:$true] %s215
          %218 = dma.vmem_to_hbm [thread:$0]  %s216, 128, %s213, %s202
        $region40: #{tpu_custom_call.1} parent=27 // pred_fallthru
          _
      $region28: #{tpu_custom_call.1} parent=5 // pred_fallthru
        _
      %p219 = scmp.le.s32.totalorder 2, %s15
      // Predicated region
      $region41: #{tpu_custom_call.1} parent=5 // pred_check
        %p220 = pneg %p219
      $region42: #{tpu_custom_call.1} parent=5 // pred_check_branch
        %222 = sbr.rel (%p220) target = $region44
      $region43: #{tpu_custom_call.1} parent=5 // pred_region
        %s223 = ssub.s32 %s15, 2
        // Predicated region
        $region45: #{tpu_custom_call.1} parent=43 // pred_check
          %p224 = pneg %p91
        $region46: #{tpu_custom_call.1} parent=43 // pred_check_branch
          %226 = sbr.rel (%p224) target = $region48
        $region47: #{tpu_custom_call.1} parent=43 // pred_region
          %s227 = sand.u32 %s76, 1
          %s228 = scalar_lea.sflag [#allocation4], %s227
          %s229 = sand.u32 %s76, 1
          %s230 = smul.addr %s229, 8
          %s231 = scalar_lea.vmem [#allocation7], %s230
          %232 = dma.done %s228, 128
        $region48: #{tpu_custom_call.1} parent=43 // pred_fallthru
          _
      $region44: #{tpu_custom_call.1} parent=5 // pred_fallthru
        _
    $region6: #{tpu_custom_call.1} parent=1 // loop_footer
      %s19 = sadd.s32 1, %s15
    $region7: #{tpu_custom_call.1} parent=1 // loop_footer_branch
      %14 = sbr.rel target = $region3
    $region8: #{tpu_custom_call.1} parent=1 // loop_exit
      _
    %233 = vsyncpa [#allocation3], 1
    %s234 = scalar_lea.sflag [#allocation3], 1
    %235 = vsyncpa %s234, 1
    %236 = vsyncpa [#allocation4], 1
    %s237 = scalar_lea.sflag [#allocation4], 1
    %238 = vsyncpa %s237, 1
    %239 = vsyncpa [#allocation5], 1
    %s240 = scalar_lea.sflag [#allocation5], 1
    %241 = vsyncpa %s240, 1

</llo_original>
